<compile_context>
chip_gen: v7x
topology: tpu7x:2x2x1
jax: 0.10.0
libtpu: 0.0.40
codegen_flags: <defaults>
</compile_context>

<pallas_src>
import jax
import jax.numpy as jnp
from jax.experimental import pallas as pl
from jax.experimental.pallas import tpu as pltpu


def _hard_calculate_kernel(pred_ref, true_ref, out_ref):
    t = true_ref[...]
    p = pred_ref[...]
    sentinel = jnp.asarray(-5.0, t.dtype)
    pred_gate = (t == sentinel).astype(t.dtype)          # 1 where true == -5
    true_gate = jnp.asarray(1.0, t.dtype) - pred_gate     # 1 - pred_gate
    out_ref[...] = pred_gate * p + true_gate * t


def hard_calculate(input_predict, input_true, true_input_gate=None):
    """Pallas implementation of HardCalculateLayer.forward.

    `true_input_gate` is accepted for interface parity with the PyTorch module
    but is ignored -- the module recomputes it from (input_true == -5).
    """
    assert input_predict.shape == input_true.shape
    assert input_predict.dtype == input_true.dtype
    orig_shape = input_true.shape

    # Present a lane-dense 2-D slab (leading dims collapsed, last dim on the
    # 128-lane axis) to the kernel; zero-cost reshape in the wrapper.
    last = orig_shape[-1] if len(orig_shape) >= 1 else 1
    lead = 1
    for s in orig_shape[:-1]:
        lead *= s
    p2 = input_predict.reshape(lead, last)
    t2 = input_true.reshape(lead, last)

    out = pl.pallas_call(
        _hard_calculate_kernel,
        out_shape=jax.ShapeDtypeStruct((lead, last), input_true.dtype),
        in_specs=[
            pl.BlockSpec(memory_space=pltpu.MemorySpace.VMEM),   # input_predict
            pl.BlockSpec(memory_space=pltpu.MemorySpace.VMEM),   # input_true
        ],
        out_specs=pl.BlockSpec(memory_space=pltpu.MemorySpace.VMEM),
    )(p2, t2)

    return out.reshape(orig_shape)


def hard_calculate_reference(input_predict, input_true, true_input_gate):
    """Pure-JAX mirror of the PyTorch forward, for verification."""
    pred_gate = (input_true == -5).astype(input_true.dtype)
    true_gate = 1 - pred_gate
    return pred_gate * input_predict + true_gate * input_true


if __name__ == "__main__":
    # Small shapes consistent with an elementwise gating layer:
    # batch=2, seq=8, hidden=128 (hidden on the 128-lane axis).
    B, S, D = 2, 8, 128

    key = jax.random.PRNGKey(0)
    kp, kt, km, kg = jax.random.split(key, 4)

    input_predict = jax.random.normal(kp, (B, S, D), jnp.float32)
    input_true = jax.random.normal(kt, (B, S, D), jnp.float32)
    # Mark ~30% of the "true" entries as missing with the exact sentinel -5.
    miss_mask = jax.random.bernoulli(km, 0.3, (B, S, D))
    input_true = jnp.where(miss_mask, jnp.float32(-5.0), input_true)
    # This tensor is part of the module's input tuple but is ignored (the
    # module overwrites it); pass it anyway for interface parity.
    true_input_gate = jax.random.normal(kg, (B, S, D), jnp.float32)

    out = hard_calculate(input_predict, input_true, true_input_gate)
    out = jax.block_until_ready(out)

    ref = jax.block_until_ready(
        hard_calculate_reference(input_predict, input_true, true_input_gate))

    assert out.shape == (B, S, D)
    assert bool(jnp.array_equal(out, ref)), "kernel mismatch vs reference"

    print("KERNEL_OK")
</pallas_src>

<mosaic_0001>
module attributes {stable_mosaic.version = 11 : i64} {
  func.func @_hard_calculate_kernel(%arg0: memref<16x128xf32, #tpu.memory_space<vmem>>, %arg1: memref<16x128xf32, #tpu.memory_space<vmem>>, %arg2: memref<16x128xf32, #tpu.memory_space<vmem>>) attributes {dimension_semantics = [], scalar_prefetch = 0 : i64, scratch_operands = 0 : i64, tpu.core_type = #tpu.core_type<tc>} {
    %c0 = arith.constant 0 : index
    %c0_0 = arith.constant 0 : index
    %0 = vector.load %arg1[%c0, %c0_0] : memref<16x128xf32, #tpu.memory_space<vmem>>, vector<16x128xf32>
    %c0_1 = arith.constant 0 : index
    %c0_2 = arith.constant 0 : index
    %1 = vector.load %arg0[%c0_1, %c0_2] : memref<16x128xf32, #tpu.memory_space<vmem>>, vector<16x128xf32>
    %cst = arith.constant -5.000000e+00 : f32
    %2 = vector.broadcast %cst : f32 to vector<16x128xf32>
    %3 = arith.cmpf oeq, %0, %2 : vector<16x128xf32>
    %4 = arith.extui %3 : vector<16x128xi1> to vector<16x128xi32>
    %5 = arith.sitofp %4 : vector<16x128xi32> to vector<16x128xf32>
    %cst_3 = arith.constant 1.000000e+00 : f32
    %6 = vector.broadcast %cst_3 : f32 to vector<16x128xf32>
    %7 = arith.subf %6, %5 : vector<16x128xf32>
    %8 = arith.mulf %5, %1 : vector<16x128xf32>
    %9 = arith.mulf %7, %0 : vector<16x128xf32>
    %10 = arith.addf %8, %9 : vector<16x128xf32>
    %c0_4 = arith.constant 0 : index
    %c0_5 = arith.constant 0 : index
    %11 = vector.load %arg2[%c0_4, %c0_5] : memref<16x128xf32, #tpu.memory_space<vmem>>, vector<16x128xf32>
    tpu.vector_store %arg2[%c0_4, %c0_5], %10 {strides = array<i32>} : memref<16x128xf32, #tpu.memory_space<vmem>>, vector<16x128xf32>,
    return
  }
}

</mosaic_0001>

<llo_original>
// kernel: tpu_custom_call.1
$region0: #{tpu_custom_call.1}
  #allocation0 [shape = 'u32[]', space=smem, size = 0x4, offset = 0x4, fixed_abs, tag = 'smem constant byte address 0x4 - core index']
  #allocation1 [shape = 'u32[144,128]{1,0:T(1,128)}', space=vmem, size = 0x12000, scoped, tag = 'internal scratch']
  %s0 = inlined_call_operand.hbm [shape: f32[16,128], index: 0, kind: input, shape index: {}]
  %s1 = inlined_call_operand.hbm [shape: f32[16,128], index: 1, kind: input, shape index: {}]
  %s2 = inlined_call_operand.hbm [shape: f32[16,128], index: 2, kind: output, shape index: {}]
  %s3 = sld [smem:[#allocation0]]
  $region26: #{tpu_custom_call.1} parent=0
    _
  %s5 = ssub.s32 1, %s3
  %s6 = scalar_select 0, %s5, %s3
  $region1: #{tpu_custom_call.1} parent=0
    #allocation2 [shape = 'u8[8192]{0}', space=vmem, size = 0x2000, scoped, tag = 'input window, operand 0, single buffered']
    #allocation3 [shape = 's32[1]{0}', space=sflag, size = 0x4, scoped, tag = 'scoped memory for tpu_custom_call.1']
    #allocation4 [shape = 's32[1]{0}', space=sflag, size = 0x4, scoped, tag = 'scoped memory for tpu_custom_call.1']
    #allocation5 [shape = 'u8[8192]{0}', space=vmem, size = 0x2000, scoped, tag = 'input window, operand 1, single buffered']
    #allocation6 [shape = 's32[1]{0}', space=sflag, size = 0x4, scoped, tag = 'scoped memory for tpu_custom_call.1']
    #allocation7 [shape = 'u8[8192]{0}', space=vmem, size = 0x2000, scoped, tag = 'output window, operand 0, single buffered']
    %7 = vsyncpa [#allocation3], 0
    %8 = vsyncpa [#allocation6], 0
    %9 = vsyncpa [#allocation4], 0
    // Predicated region
    $region2: #{tpu_custom_call.1} parent=1 // pred_check
      _
    $region3: #{tpu_custom_call.1} parent=1 // pred_check_branch
      %11 = sbr.rel (0) target = $region5
    $region4: #{tpu_custom_call.1} parent=1 // pred_region
      %s13 = ssub.s32 256, 256
      %14 = vsyncadd [#allocation3], %s13
      %s15 = sshll.u32 [#allocation2], 4
      %s16 = int_to_ptr.vmem [resolvable:$true] %s15
      %21 = dma.hbm_to_vmem [thread:$0]  %s0, 256, %s16, [#allocation3], 128, 128, 8
    $region5: #{tpu_custom_call.1} parent=1 // pred_fallthru
      _
    // Predicated region
    $region6: #{tpu_custom_call.1} parent=1 // pred_check
      _
    $region7: #{tpu_custom_call.1} parent=1 // pred_check_branch
      %23 = sbr.rel (0) target = $region9
    $region8: #{tpu_custom_call.1} parent=1 // pred_region
      %s25 = ssub.s32 256, 256
      %26 = vsyncadd [#allocation6], %s25
      %s27 = sshll.u32 [#allocation5], 4
      %s28 = int_to_ptr.vmem [resolvable:$true] %s27
      %33 = dma.hbm_to_vmem [thread:$0]  %s1, 256, %s28, [#allocation6], 128, 128, 8
    $region9: #{tpu_custom_call.1} parent=1 // pred_fallthru
      _
    // Predicated region
    $region10: #{tpu_custom_call.1} parent=1 // pred_check
      _
    $region11: #{tpu_custom_call.1} parent=1 // pred_check_branch
      %35 = sbr.rel (0) target = $region13
    $region12: #{tpu_custom_call.1} parent=1 // pred_region
      %36 = dma.done [#allocation3], 256
    $region13: #{tpu_custom_call.1} parent=1 // pred_fallthru
      _
    // Predicated region
    $region14: #{tpu_custom_call.1} parent=1 // pred_check
      _
    $region15: #{tpu_custom_call.1} parent=1 // pred_check_branch
      %38 = sbr.rel (0) target = $region17
    $region16: #{tpu_custom_call.1} parent=1 // pred_region
      %39 = dma.done [#allocation6], 256
    $region17: #{tpu_custom_call.1} parent=1 // pred_fallthru
      _
    %v40 = vld [vmem:[#allocation5] sm:$0xff]
    %v41 = vld [vmem:[#allocation5 + $0x8] sm:$0xff]
    %v42 = vld [vmem:[#allocation2] sm:$0xff]
    %v43 = vld [vmem:[#allocation2 + $0x8] sm:$0xff]
    %vm44 = vcmp.eq.f32.partialorder %v40, -5.0
    %vm45 = vcmp.eq.f32.partialorder %v41, -5.0
    %v46 = vsel %vm44, 1, 0
    %v47 = vsel %vm45, 1, 0
    %v48 = vcvt.s32.f32 %v46
    %v49 = vcvt.s32.f32 %v47
    %v50 = vsub.f32 1.0, %v48
    %v51 = vsub.f32 1.0, %v49
    %v52 = vmul.f32 %v48, %v42
    %v53 = vmul.f32 %v49, %v43
    %v54 = vmul.f32 %v50, %v40
    %v55 = vmul.f32 %v51, %v41
    %v56 = vadd.f32 %v52, %v54
    %v57 = vadd.f32 %v53, %v55
    %58 = vst [vmem:[#allocation7] sm:$0xff] %v56
    %59 = vst [vmem:[#allocation7 + $0x8] sm:$0xff] %v57
    // Predicated region
    $region18: #{tpu_custom_call.1} parent=1 // pred_check
      _
    $region19: #{tpu_custom_call.1} parent=1 // pred_check_branch
      %61 = sbr.rel (0) target = $region21
    $region20: #{tpu_custom_call.1} parent=1 // pred_region
      %s63 = ssub.s32 256, 256
      %64 = vsyncadd [#allocation4], %s63
      %s65 = sshll.u32 [#allocation7], 4
      %s66 = int_to_ptr.vmem [resolvable:$true] %s65
      %71 = dma.vmem_to_hbm [thread:$0]  %s66, 256, %s2, [#allocation4], 128, 128, 8
    $region21: #{tpu_custom_call.1} parent=1 // pred_fallthru
      _
    // Predicated region
    $region22: #{tpu_custom_call.1} parent=1 // pred_check
      _
    $region23: #{tpu_custom_call.1} parent=1 // pred_check_branch
      %73 = sbr.rel (0) target = $region25
    $region24: #{tpu_custom_call.1} parent=1 // pred_region
      %74 = dma.done [#allocation4], 256
    $region25: #{tpu_custom_call.1} parent=1 // pred_fallthru
      _
    %75 = vsyncpa [#allocation3], 1
    %76 = vsyncpa [#allocation6], 1
    %77 = vsyncpa [#allocation4], 1

</llo_original>
